<compile_context>
chip_gen: v6e
topology: v6e:2x2x1
jax: 0.10.0
libtpu: 0.0.40
codegen_flags: <defaults>
</compile_context>

<pallas_src>
import functools

import jax
import jax.numpy as jnp
from jax import lax
from jax.experimental import pallas as pl
from jax.experimental.pallas import tpu as pltpu

_CHUNK = 8      # sublane-group height of one f32 vreg
_LANES = 128    # lane width


def _ce_dice_kernel(x_ref, y_ref, out_ref, *, num_classes, num_chunks):
    """One (1, C, TH, 128) logits tile + (1, 1, TH, 128) target tile.

    Grid = (N, G, T); T is the spatial reduction axis.  Statistics accumulate
    directly into the resident output block out_ref of shape (1, 1+3C, 8, 128):
        row 0          : CE partial sums
        rows 1..C      : per-class intersection  sum(p_c * [t==c])
        rows 1+C..2C   : per-class prob sums     sum(p_c)   (valid pixels only)
        rows 1+2C..3C  : per-class target counts sum([t==c])
    The lane/sublane reduction of these partials is done in the JAX wrapper.
    """
    C = num_classes
    ti = pl.program_id(2)

    @pl.when(ti == 0)
    def _():
        out_ref[...] = jnp.zeros(out_ref.shape, out_ref.dtype)

    zero = jnp.zeros((_CHUNK, _LANES), jnp.float32)
    init = (zero,) * (1 + 3 * C)

    def body(r, carry):
        r0 = pl.multiple_of(r * _CHUNK, _CHUNK)
        tgt = y_ref[0, 0, pl.ds(r0, _CHUNK), :]                       # (8,128) i32
        xs = [x_ref[0, c, pl.ds(r0, _CHUNK), :].astype(jnp.float32)
              for c in range(C)]

        m = xs[0]
        for c in range(1, C):
            m = jnp.maximum(m, xs[c])                                 # VALU
        es = [jnp.exp(x - m) for x in xs]                             # EUP
        denom = es[0]
        for c in range(1, C):
            denom = denom + es[c]
        log_denom = jnp.log(denom)                                    # exact (CE)
        inv_denom = pl.reciprocal(denom, approx=True)                 # dice only

        # Padded pixels carry target == C -> excluded from every statistic.
        # TODO(synk): CrossEntropyLoss ignore_index (-100) is not handled.
        valid = (tgt < C).astype(jnp.float32)

        new = list(carry)
        x_tgt = zero
        for c in range(C):
            mask_c = (tgt == c).astype(jnp.float32)
            prob_c = es[c] * inv_denom
            new[1 + c] = new[1 + c] + prob_c * mask_c                 # intersection
            new[1 + C + c] = new[1 + C + c] + prob_c * valid          # prob sum
            new[1 + 2 * C + c] = new[1 + 2 * C + c] + mask_c          # target count
            x_tgt = x_tgt + mask_c * xs[c]
        # CE per pixel: -log p[target] = m + log(sum exp) - x[target]
        new[0] = new[0] + ((m + log_denom) - x_tgt) * valid
        return tuple(new)

    parts = lax.fori_loop(0, num_chunks, body, init,
                          unroll=min(8, num_chunks))

    # One vreg-sized read-modify-write per statistic per grid step.
    for i in range(1 + 3 * C):
        out_ref[0, i] += parts[i]


def _round_up(x, m):
    return ((x + m - 1) // m) * m


@functools.partial(jax.jit, static_argnames=("w",))
def cross_entropy_plus_dice_loss(y_hat, y, *, w=0.5):
    """y_hat: (N, C, H, W) float logits (f32 or bf16).  y: (N, 1, H, W) int labels."""
    N, C, H, W = y_hat.shape
    HW = H * W
    P = N * HW                           # true pixel count (CE denominator)

    # Spatial-group axis for megacore: use it when N alone would leave a
    # v7x TensorCore idle or imbalanced (no-op on single-TC v5e/v6e).
    G = 1 if N % 2 == 0 else 2

    # Lane-dense layout: flatten (H, W) -> pixels, pad to a whole number of
    # (TH, 128) tiles per group.  Padded targets get class id C (fully masked).
    hp_raw = -(-HW // _LANES)
    rows_per_group = -(-hp_raw // G)

    # Tile height: target >= 64K pixels/block, capped so double-buffered input
    # blocks stay under ~8 MiB (safe for v5e 16 MiB scoped default and v7x's
    # smaller 64 MiB VMEM / 32 MiB scoped default).
    itemsize = jnp.dtype(y_hat.dtype).itemsize
    budget = 8 * 1024 * 1024
    th_budget = budget // (2 * _LANES * (C * itemsize + 4))
    th_cap = max(_CHUNK, (min(1024, th_budget) // _CHUNK) * _CHUNK)
    TH = min(th_cap, _round_up(max(rows_per_group, 1), _CHUNK))
    T = -(-rows_per_group // TH)
    Hp = G * T * TH
    HWp = Hp * _LANES

    x3 = y_hat.reshape(N, C, HW)
    t3 = y.reshape(N, 1, HW).astype(jnp.int32)
    pad = HWp - HW
    if pad:
        x3 = jnp.pad(x3, ((0, 0), (0, 0), (0, pad)))
        t3 = jnp.pad(t3, ((0, 0), (0, 0), (0, pad)), constant_values=C)
    x4 = x3.reshape(N, C, Hp, _LANES)
    t4 = t3.reshape(N, 1, Hp, _LANES)

    R = 1 + 3 * C
    kernel = functools.partial(_ce_dice_kernel, num_classes=C,
                               num_chunks=TH // _CHUNK)

    stats = pl.pallas_call(
        kernel,
        out_shape=jax.ShapeDtypeStruct((N * G, R, _CHUNK, _LANES), jnp.float32),
        grid_spec=pltpu.PrefetchScalarGridSpec(
            num_scalar_prefetch=0,
            grid=(N, G, T),
            in_specs=[
                pl.BlockSpec((1, C, TH, _LANES),
                             lambda n, g, t: (n, 0, g * T + t, 0)),
                pl.BlockSpec((1, 1, TH, _LANES),
                             lambda n, g, t: (n, 0, g * T + t, 0)),
            ],
            out_specs=pl.BlockSpec((1, R, _CHUNK, _LANES),
                                   lambda n, g, t: (n * G + g, 0, 0, 0)),
        ),
        compiler_params=pltpu.CompilerParams(
            dimension_semantics=("parallel", "parallel", "arbitrary")),
    )(x4, t4)

    # Tiny final reductions in plain JAX (fused by XLA).
    s = jnp.sum(stats, axis=(0, 2, 3))           # (1 + 3C,)
    ce = s[0] / P                                # mean over true pixels
    inter = s[1:1 + C]
    psum = s[1 + C:1 + 2 * C]
    tsum = s[1 + 2 * C:1 + 3 * C]

    eps = 1e-6
    dice_per_class = (2.0 * inter + eps) / (psum + tsum + eps)
    dice_loss = 1.0 - jnp.mean(dice_per_class)
    return ce + w * dice_loss


def _reference(y_hat, y, w):
    """Pure-JAX reference for sanity checking."""
    N, C, H, W = y_hat.shape
    x = jnp.transpose(y_hat, (0, 2, 3, 1)).reshape(-1, C).astype(jnp.float32)
    t = jnp.squeeze(y, axis=1).reshape(-1).astype(jnp.int32)
    logp = jax.nn.log_softmax(x, axis=-1)
    ce = -jnp.mean(jnp.take_along_axis(logp, t[:, None], axis=-1))
    probs = jnp.exp(logp)
    onehot = jax.nn.one_hot(t, C, dtype=jnp.float32)
    eps = 1e-6
    inter = jnp.sum(probs * onehot, axis=0)
    union = jnp.sum(probs, axis=0) + jnp.sum(onehot, axis=0)
    dice = (2.0 * inter + eps) / (union + eps)
    return ce + w * (1.0 - jnp.mean(dice))


if __name__ == "__main__":
    key = jax.random.PRNGKey(0)
    k1, k2 = jax.random.split(key)

    N, C, H, W = 2, 4, 16, 16
    w = 0.5  # module __init__ weight; deterministic in-script

    y_hat = jax.random.normal(k1, (N, C, H, W), dtype=jnp.float32)
    y = jax.random.randint(k2, (N, 1, H, W), 0, C, dtype=jnp.int32)

    loss = cross_entropy_plus_dice_loss(y_hat, y, w=w)
    loss = jax.block_until_ready(loss)

    ref = _reference(y_hat, y, w)
    # approx reciprocal perturbs only the dice statistics (~1e-4 relative)
    assert jnp.allclose(loss, ref, rtol=2e-3, atol=2e-3), (loss, ref)

    print("KERNEL_OK")
</pallas_src>

<mosaic_0001>
module attributes {stable_mosaic.version = 11 : i64} {
  func.func @_ce_dice_kernel(%arg0: i32, %arg1: i32, %arg2: i32, %arg3: memref<1x4x8x128xf32, #tpu.memory_space<vmem>>, %arg4: memref<1x1x8x128xi32, #tpu.memory_space<vmem>>, %arg5: memref<1x13x8x128xf32, #tpu.memory_space<vmem>>) attributes {dimension_semantics = [#tpu.dimension_semantics<parallel>, #tpu.dimension_semantics<parallel>, #tpu.dimension_semantics<arbitrary>], iteration_bounds = array<i64: 2, 1, 1>, scalar_prefetch = 0 : i64, scratch_operands = 0 : i64, tpu.core_type = #tpu.core_type<tc>, window_params = [{transform_indices = @transform_0, window_bounds = array<i64: 1, 4, 8, 128>}, {transform_indices = @transform_1, window_bounds = array<i64: 1, 1, 8, 128>}, {transform_indices = @transform_2, window_bounds = array<i64: 1, 13, 8, 128>}]} {
    %c0_i32 = arith.constant 0 : i32
    %0 = arith.cmpi eq, %arg2, %c0_i32 : i32
    %1 = arith.extui %0 : i1 to i32
    %c0_i32_0 = arith.constant 0 : i32
    %2 = arith.cmpi ne, %1, %c0_i32_0 : i32
    scf.if %2 {
      %cst_110 = arith.constant 0.000000e+00 : f32
      %171 = vector.broadcast %cst_110 : f32 to vector<1x13x8x128xf32>
      %c0_111 = arith.constant 0 : index
      %c0_112 = arith.constant 0 : index
      %c0_113 = arith.constant 0 : index
      %c0_114 = arith.constant 0 : index
      %172 = vector.load %arg5[%c0_111, %c0_112, %c0_113, %c0_114] : memref<1x13x8x128xf32, #tpu.memory_space<vmem>>, vector<1x13x8x128xf32>
      tpu.vector_store %arg5[%c0_111, %c0_112, %c0_113, %c0_114], %171 {strides = array<i32>} : memref<1x13x8x128xf32, #tpu.memory_space<vmem>>, vector<1x13x8x128xf32>,
    } else {
    }
    %cst = arith.constant 0.000000e+00 : f32
    %3 = vector.broadcast %cst : f32 to vector<8x128xf32>
    %c0_i32_1 = arith.constant 0 : i32
    %c8_i32 = arith.constant 8 : i32
    %4 = arith.muli %c0_i32_1, %c8_i32 : i32
    %5 = tpu.assume_multiple %4, 8 : i32
    %c0 = arith.constant 0 : index
    %c0_2 = arith.constant 0 : index
    %6 = arith.index_cast %5 : i32 to index
    %c0_3 = arith.constant 0 : index
    %7 = vector.load %arg4[%c0, %c0_2, %6, %c0_3] : memref<1x1x8x128xi32, #tpu.memory_space<vmem>>, vector<1x1x8x128xi32>
    %8 = vector.shape_cast %7 : vector<1x1x8x128xi32> to vector<8x128xi32>
    %c0_4 = arith.constant 0 : index
    %c0_5 = arith.constant 0 : index
    %9 = arith.index_cast %5 : i32 to index
    %c0_6 = arith.constant 0 : index
    %10 = vector.load %arg3[%c0_4, %c0_5, %9, %c0_6] : memref<1x4x8x128xf32, #tpu.memory_space<vmem>>, vector<1x1x8x128xf32>
    %11 = vector.shape_cast %10 : vector<1x1x8x128xf32> to vector<8x128xf32>
    %c0_7 = arith.constant 0 : index
    %c1 = arith.constant 1 : index
    %12 = arith.index_cast %5 : i32 to index
    %c0_8 = arith.constant 0 : index
    %13 = vector.load %arg3[%c0_7, %c1, %12, %c0_8] : memref<1x4x8x128xf32, #tpu.memory_space<vmem>>, vector<1x1x8x128xf32>
    %14 = vector.shape_cast %13 : vector<1x1x8x128xf32> to vector<8x128xf32>
    %c0_9 = arith.constant 0 : index
    %c2 = arith.constant 2 : index
    %15 = arith.index_cast %5 : i32 to index
    %c0_10 = arith.constant 0 : index
    %16 = vector.load %arg3[%c0_9, %c2, %15, %c0_10] : memref<1x4x8x128xf32, #tpu.memory_space<vmem>>, vector<1x1x8x128xf32>
    %17 = vector.shape_cast %16 : vector<1x1x8x128xf32> to vector<8x128xf32>
    %c0_11 = arith.constant 0 : index
    %c3 = arith.constant 3 : index
    %18 = arith.index_cast %5 : i32 to index
    %c0_12 = arith.constant 0 : index
    %19 = vector.load %arg3[%c0_11, %c3, %18, %c0_12] : memref<1x4x8x128xf32, #tpu.memory_space<vmem>>, vector<1x1x8x128xf32>
    %20 = vector.shape_cast %19 : vector<1x1x8x128xf32> to vector<8x128xf32>
    %21 = arith.maximumf %11, %14 : vector<8x128xf32>
    %22 = arith.maximumf %21, %17 : vector<8x128xf32>
    %23 = arith.maximumf %22, %20 : vector<8x128xf32>
    %24 = arith.subf %11, %23 : vector<8x128xf32>
    %25 = math.exp %24 : vector<8x128xf32>
    %26 = arith.subf %14, %23 : vector<8x128xf32>
    %27 = math.exp %26 : vector<8x128xf32>
    %28 = arith.subf %17, %23 : vector<8x128xf32>
    %29 = math.exp %28 : vector<8x128xf32>
    %30 = arith.subf %20, %23 : vector<8x128xf32>
    %31 = math.exp %30 : vector<8x128xf32>
    %32 = arith.addf %25, %27 : vector<8x128xf32>
    %33 = arith.addf %32, %29 : vector<8x128xf32>
    %34 = arith.addf %33, %31 : vector<8x128xf32>
    %35 = math.log %34 : vector<8x128xf32>
    %36 = tpu.reciprocal %34 {approx = true} : vector<8x128xf32> -> vector<8x128xf32>
    %c4_i32 = arith.constant 4 : i32
    %37 = vector.broadcast %c4_i32 : i32 to vector<8x128xi32>
    %38 = arith.cmpi slt, %8, %37 : vector<8x128xi32>
    %39 = arith.extui %38 : vector<8x128xi1> to vector<8x128xi32>
    %40 = arith.sitofp %39 : vector<8x128xi32> to vector<8x128xf32>
    %c0_i32_13 = arith.constant 0 : i32
    %41 = vector.broadcast %c0_i32_13 : i32 to vector<8x128xi32>
    %42 = arith.cmpi eq, %8, %41 : vector<8x128xi32>
    %43 = arith.extui %42 : vector<8x128xi1> to vector<8x128xi32>
    %44 = arith.sitofp %43 : vector<8x128xi32> to vector<8x128xf32>
    %45 = arith.mulf %25, %36 : vector<8x128xf32>
    %46 = arith.mulf %45, %44 : vector<8x128xf32>
    %47 = arith.addf %3, %46 : vector<8x128xf32>
    %48 = arith.mulf %45, %40 : vector<8x128xf32>
    %49 = arith.addf %3, %48 : vector<8x128xf32>
    %50 = arith.addf %3, %44 : vector<8x128xf32>
    %51 = arith.mulf %44, %11 : vector<8x128xf32>
    %52 = arith.addf %3, %51 : vector<8x128xf32>
    %c1_i32 = arith.constant 1 : i32
    %53 = vector.broadcast %c1_i32 : i32 to vector<8x128xi32>
    %54 = arith.cmpi eq, %8, %53 : vector<8x128xi32>
    %55 = arith.extui %54 : vector<8x128xi1> to vector<8x128xi32>
    %56 = arith.sitofp %55 : vector<8x128xi32> to vector<8x128xf32>
    %57 = arith.mulf %27, %36 : vector<8x128xf32>
    %58 = arith.mulf %57, %56 : vector<8x128xf32>
    %59 = arith.addf %3, %58 : vector<8x128xf32>
    %60 = arith.mulf %57, %40 : vector<8x128xf32>
    %61 = arith.addf %3, %60 : vector<8x128xf32>
    %62 = arith.addf %3, %56 : vector<8x128xf32>
    %63 = arith.mulf %56, %14 : vector<8x128xf32>
    %64 = arith.addf %52, %63 : vector<8x128xf32>
    %c2_i32 = arith.constant 2 : i32
    %65 = vector.broadcast %c2_i32 : i32 to vector<8x128xi32>
    %66 = arith.cmpi eq, %8, %65 : vector<8x128xi32>
    %67 = arith.extui %66 : vector<8x128xi1> to vector<8x128xi32>
    %68 = arith.sitofp %67 : vector<8x128xi32> to vector<8x128xf32>
    %69 = arith.mulf %29, %36 : vector<8x128xf32>
    %70 = arith.mulf %69, %68 : vector<8x128xf32>
    %71 = arith.addf %3, %70 : vector<8x128xf32>
    %72 = arith.mulf %69, %40 : vector<8x128xf32>
    %73 = arith.addf %3, %72 : vector<8x128xf32>
    %74 = arith.addf %3, %68 : vector<8x128xf32>
    %75 = arith.mulf %68, %17 : vector<8x128xf32>
    %76 = arith.addf %64, %75 : vector<8x128xf32>
    %c3_i32 = arith.constant 3 : i32
    %77 = vector.broadcast %c3_i32 : i32 to vector<8x128xi32>
    %78 = arith.cmpi eq, %8, %77 : vector<8x128xi32>
    %79 = arith.extui %78 : vector<8x128xi1> to vector<8x128xi32>
    %80 = arith.sitofp %79 : vector<8x128xi32> to vector<8x128xf32>
    %81 = arith.mulf %31, %36 : vector<8x128xf32>
    %82 = arith.mulf %81, %80 : vector<8x128xf32>
    %83 = arith.addf %3, %82 : vector<8x128xf32>
    %84 = arith.mulf %81, %40 : vector<8x128xf32>
    %85 = arith.addf %3, %84 : vector<8x128xf32>
    %86 = arith.addf %3, %80 : vector<8x128xf32>
    %87 = arith.mulf %80, %20 : vector<8x128xf32>
    %88 = arith.addf %76, %87 : vector<8x128xf32>
    %89 = arith.addf %23, %35 : vector<8x128xf32>
    %90 = arith.subf %89, %88 : vector<8x128xf32>
    %91 = arith.mulf %90, %40 : vector<8x128xf32>
    %92 = arith.addf %3, %91 : vector<8x128xf32>
    %c1_i32_14 = arith.constant 1 : i32
    %c0_15 = arith.constant 0 : index
    %c0_16 = arith.constant 0 : index
    %c0_17 = arith.constant 0 : index
    %c0_18 = arith.constant 0 : index
    %93 = vector.load %arg5[%c0_15, %c0_16, %c0_17, %c0_18] : memref<1x13x8x128xf32, #tpu.memory_space<vmem>>, vector<1x1x8x128xf32>
    %94 = vector.shape_cast %93 : vector<1x1x8x128xf32> to vector<8x128xf32>
    %95 = arith.addf %94, %92 : vector<8x128xf32>
    %c0_19 = arith.constant 0 : index
    %c0_20 = arith.constant 0 : index
    %c0_21 = arith.constant 0 : index
    %c0_22 = arith.constant 0 : index
    %96 = vector.load %arg5[%c0_19, %c0_20, %c0_21, %c0_22] : memref<1x13x8x128xf32, #tpu.memory_space<vmem>>, vector<1x1x8x128xf32>
    %97 = vector.shape_cast %96 : vector<1x1x8x128xf32> to vector<8x128xf32>
    %98 = vector.shape_cast %95 : vector<8x128xf32> to vector<1x1x8x128xf32>
    tpu.vector_store %arg5[%c0_19, %c0_20, %c0_21, %c0_22], %98 {strides = array<i32>} : memref<1x13x8x128xf32, #tpu.memory_space<vmem>>, vector<1x1x8x128xf32>,
    %c0_23 = arith.constant 0 : index
    %c1_24 = arith.constant 1 : index
    %c0_25 = arith.constant 0 : index
    %c0_26 = arith.constant 0 : index
    %99 = vector.load %arg5[%c0_23, %c1_24, %c0_25, %c0_26] : memref<1x13x8x128xf32, #tpu.memory_space<vmem>>, vector<1x1x8x128xf32>
    %100 = vector.shape_cast %99 : vector<1x1x8x128xf32> to vector<8x128xf32>
    %101 = arith.addf %100, %47 : vector<8x128xf32>
    %c0_27 = arith.constant 0 : index
    %c1_28 = arith.constant 1 : index
    %c0_29 = arith.constant 0 : index
    %c0_30 = arith.constant 0 : index
    %102 = vector.load %arg5[%c0_27, %c1_28, %c0_29, %c0_30] : memref<1x13x8x128xf32, #tpu.memory_space<vmem>>, vector<1x1x8x128xf32>
    %103 = vector.shape_cast %102 : vector<1x1x8x128xf32> to vector<8x128xf32>
    %104 = vector.shape_cast %101 : vector<8x128xf32> to vector<1x1x8x128xf32>
    tpu.vector_store %arg5[%c0_27, %c1_28, %c0_29, %c0_30], %104 {strides = array<i32>} : memref<1x13x8x128xf32, #tpu.memory_space<vmem>>, vector<1x1x8x128xf32>,
    %c0_31 = arith.constant 0 : index
    %c2_32 = arith.constant 2 : index
    %c0_33 = arith.constant 0 : index
    %c0_34 = arith.constant 0 : index
    %105 = vector.load %arg5[%c0_31, %c2_32, %c0_33, %c0_34] : memref<1x13x8x128xf32, #tpu.memory_space<vmem>>, vector<1x1x8x128xf32>
    %106 = vector.shape_cast %105 : vector<1x1x8x128xf32> to vector<8x128xf32>
    %107 = arith.addf %106, %59 : vector<8x128xf32>
    %c0_35 = arith.constant 0 : index
    %c2_36 = arith.constant 2 : index
    %c0_37 = arith.constant 0 : index
    %c0_38 = arith.constant 0 : index
    %108 = vector.load %arg5[%c0_35, %c2_36, %c0_37, %c0_38] : memref<1x13x8x128xf32, #tpu.memory_space<vmem>>, vector<1x1x8x128xf32>
    %109 = vector.shape_cast %108 : vector<1x1x8x128xf32> to vector<8x128xf32>
    %110 = vector.shape_cast %107 : vector<8x128xf32> to vector<1x1x8x128xf32>
    tpu.vector_store %arg5[%c0_35, %c2_36, %c0_37, %c0_38], %110 {strides = array<i32>} : memref<1x13x8x128xf32, #tpu.memory_space<vmem>>, vector<1x1x8x128xf32>,
    %c0_39 = arith.constant 0 : index
    %c3_40 = arith.constant 3 : index
    %c0_41 = arith.constant 0 : index
    %c0_42 = arith.constant 0 : index
    %111 = vector.load %arg5[%c0_39, %c3_40, %c0_41, %c0_42] : memref<1x13x8x128xf32, #tpu.memory_space<vmem>>, vector<1x1x8x128xf32>
    %112 = vector.shape_cast %111 : vector<1x1x8x128xf32> to vector<8x128xf32>
    %113 = arith.addf %112, %71 : vector<8x128xf32>
    %c0_43 = arith.constant 0 : index
    %c3_44 = arith.constant 3 : index
    %c0_45 = arith.constant 0 : index
    %c0_46 = arith.constant 0 : index
    %114 = vector.load %arg5[%c0_43, %c3_44, %c0_45, %c0_46] : memref<1x13x8x128xf32, #tpu.memory_space<vmem>>, vector<1x1x8x128xf32>
    %115 = vector.shape_cast %114 : vector<1x1x8x128xf32> to vector<8x128xf32>
    %116 = vector.shape_cast %113 : vector<8x128xf32> to vector<1x1x8x128xf32>
    tpu.vector_store %arg5[%c0_43, %c3_44, %c0_45, %c0_46], %116 {strides = array<i32>} : memref<1x13x8x128xf32, #tpu.memory_space<vmem>>, vector<1x1x8x128xf32>,
    %c0_47 = arith.constant 0 : index
    %c4 = arith.constant 4 : index
    %c0_48 = arith.constant 0 : index
    %c0_49 = arith.constant 0 : index
    %117 = vector.load %arg5[%c0_47, %c4, %c0_48, %c0_49] : memref<1x13x8x128xf32, #tpu.memory_space<vmem>>, vector<1x1x8x128xf32>
    %118 = vector.shape_cast %117 : vector<1x1x8x128xf32> to vector<8x128xf32>
    %119 = arith.addf %118, %83 : vector<8x128xf32>
    %c0_50 = arith.constant 0 : index
    %c4_51 = arith.constant 4 : index
    %c0_52 = arith.constant 0 : index
    %c0_53 = arith.constant 0 : index
    %120 = vector.load %arg5[%c0_50, %c4_51, %c0_52, %c0_53] : memref<1x13x8x128xf32, #tpu.memory_space<vmem>>, vector<1x1x8x128xf32>
    %121 = vector.shape_cast %120 : vector<1x1x8x128xf32> to vector<8x128xf32>
    %122 = vector.shape_cast %119 : vector<8x128xf32> to vector<1x1x8x128xf32>
    tpu.vector_store %arg5[%c0_50, %c4_51, %c0_52, %c0_53], %122 {strides = array<i32>} : memref<1x13x8x128xf32, #tpu.memory_space<vmem>>, vector<1x1x8x128xf32>,
    %c0_54 = arith.constant 0 : index
    %c5 = arith.constant 5 : index
    %c0_55 = arith.constant 0 : index
    %c0_56 = arith.constant 0 : index
    %123 = vector.load %arg5[%c0_54, %c5, %c0_55, %c0_56] : memref<1x13x8x128xf32, #tpu.memory_space<vmem>>, vector<1x1x8x128xf32>
    %124 = vector.shape_cast %123 : vector<1x1x8x128xf32> to vector<8x128xf32>
    %125 = arith.addf %124, %49 : vector<8x128xf32>
    %c0_57 = arith.constant 0 : index
    %c5_58 = arith.constant 5 : index
    %c0_59 = arith.constant 0 : index
    %c0_60 = arith.constant 0 : index
    %126 = vector.load %arg5[%c0_57, %c5_58, %c0_59, %c0_60] : memref<1x13x8x128xf32, #tpu.memory_space<vmem>>, vector<1x1x8x128xf32>
    %127 = vector.shape_cast %126 : vector<1x1x8x128xf32> to vector<8x128xf32>
    %128 = vector.shape_cast %125 : vector<8x128xf32> to vector<1x1x8x128xf32>
    tpu.vector_store %arg5[%c0_57, %c5_58, %c0_59, %c0_60], %128 {strides = array<i32>} : memref<1x13x8x128xf32, #tpu.memory_space<vmem>>, vector<1x1x8x128xf32>,
    %c0_61 = arith.constant 0 : index
    %c6 = arith.constant 6 : index
    %c0_62 = arith.constant 0 : index
    %c0_63 = arith.constant 0 : index
    %129 = vector.load %arg5[%c0_61, %c6, %c0_62, %c0_63] : memref<1x13x8x128xf32, #tpu.memory_space<vmem>>, vector<1x1x8x128xf32>
    %130 = vector.shape_cast %129 : vector<1x1x8x128xf32> to vector<8x128xf32>
    %131 = arith.addf %130, %61 : vector<8x128xf32>
    %c0_64 = arith.constant 0 : index
    %c6_65 = arith.constant 6 : index
    %c0_66 = arith.constant 0 : index
    %c0_67 = arith.constant 0 : index
    %132 = vector.load %arg5[%c0_64, %c6_65, %c0_66, %c0_67] : memref<1x13x8x128xf32, #tpu.memory_space<vmem>>, vector<1x1x8x128xf32>
    %133 = vector.shape_cast %132 : vector<1x1x8x128xf32> to vector<8x128xf32>
    %134 = vector.shape_cast %131 : vector<8x128xf32> to vector<1x1x8x128xf32>
    tpu.vector_store %arg5[%c0_64, %c6_65, %c0_66, %c0_67], %134 {strides = array<i32>} : memref<1x13x8x128xf32, #tpu.memory_space<vmem>>, vector<1x1x8x128xf32>,
    %c0_68 = arith.constant 0 : index
    %c7 = arith.constant 7 : index
    %c0_69 = arith.constant 0 : index
    %c0_70 = arith.constant 0 : index
    %135 = vector.load %arg5[%c0_68, %c7, %c0_69, %c0_70] : memref<1x13x8x128xf32, #tpu.memory_space<vmem>>, vector<1x1x8x128xf32>
    %136 = vector.shape_cast %135 : vector<1x1x8x128xf32> to vector<8x128xf32>
    %137 = arith.addf %136, %73 : vector<8x128xf32>
    %c0_71 = arith.constant 0 : index
    %c7_72 = arith.constant 7 : index
    %c0_73 = arith.constant 0 : index
    %c0_74 = arith.constant 0 : index
    %138 = vector.load %arg5[%c0_71, %c7_72, %c0_73, %c0_74] : memref<1x13x8x128xf32, #tpu.memory_space<vmem>>, vector<1x1x8x128xf32>
    %139 = vector.shape_cast %138 : vector<1x1x8x128xf32> to vector<8x128xf32>
    %140 = vector.shape_cast %137 : vector<8x128xf32> to vector<1x1x8x128xf32>
    tpu.vector_store %arg5[%c0_71, %c7_72, %c0_73, %c0_74], %140 {strides = array<i32>} : memref<1x13x8x128xf32, #tpu.memory_space<vmem>>, vector<1x1x8x128xf32>,
    %c0_75 = arith.constant 0 : index
    %c8 = arith.constant 8 : index
    %c0_76 = arith.constant 0 : index
    %c0_77 = arith.constant 0 : index
    %141 = vector.load %arg5[%c0_75, %c8, %c0_76, %c0_77] : memref<1x13x8x128xf32, #tpu.memory_space<vmem>>, vector<1x1x8x128xf32>
    %142 = vector.shape_cast %141 : vector<1x1x8x128xf32> to vector<8x128xf32>
    %143 = arith.addf %142, %85 : vector<8x128xf32>
    %c0_78 = arith.constant 0 : index
    %c8_79 = arith.constant 8 : index
    %c0_80 = arith.constant 0 : index
    %c0_81 = arith.constant 0 : index
    %144 = vector.load %arg5[%c0_78, %c8_79, %c0_80, %c0_81] : memref<1x13x8x128xf32, #tpu.memory_space<vmem>>, vector<1x1x8x128xf32>
    %145 = vector.shape_cast %144 : vector<1x1x8x128xf32> to vector<8x128xf32>
    %146 = vector.shape_cast %143 : vector<8x128xf32> to vector<1x1x8x128xf32>
    tpu.vector_store %arg5[%c0_78, %c8_79, %c0_80, %c0_81], %146 {strides = array<i32>} : memref<1x13x8x128xf32, #tpu.memory_space<vmem>>, vector<1x1x8x128xf32>,
    %c0_82 = arith.constant 0 : index
    %c9 = arith.constant 9 : index
    %c0_83 = arith.constant 0 : index
    %c0_84 = arith.constant 0 : index
    %147 = vector.load %arg5[%c0_82, %c9, %c0_83, %c0_84] : memref<1x13x8x128xf32, #tpu.memory_space<vmem>>, vector<1x1x8x128xf32>
    %148 = vector.shape_cast %147 : vector<1x1x8x128xf32> to vector<8x128xf32>
    %149 = arith.addf %148, %50 : vector<8x128xf32>
    %c0_85 = arith.constant 0 : index
    %c9_86 = arith.constant 9 : index
    %c0_87 = arith.constant 0 : index
    %c0_88 = arith.constant 0 : index
    %150 = vector.load %arg5[%c0_85, %c9_86, %c0_87, %c0_88] : memref<1x13x8x128xf32, #tpu.memory_space<vmem>>, vector<1x1x8x128xf32>
    %151 = vector.shape_cast %150 : vector<1x1x8x128xf32> to vector<8x128xf32>
    %152 = vector.shape_cast %149 : vector<8x128xf32> to vector<1x1x8x128xf32>
    tpu.vector_store %arg5[%c0_85, %c9_86, %c0_87, %c0_88], %152 {strides = array<i32>} : memref<1x13x8x128xf32, #tpu.memory_space<vmem>>, vector<1x1x8x128xf32>,
    %c0_89 = arith.constant 0 : index
    %c10 = arith.constant 10 : index
    %c0_90 = arith.constant 0 : index
    %c0_91 = arith.constant 0 : index
    %153 = vector.load %arg5[%c0_89, %c10, %c0_90, %c0_91] : memref<1x13x8x128xf32, #tpu.memory_space<vmem>>, vector<1x1x8x128xf32>
    %154 = vector.shape_cast %153 : vector<1x1x8x128xf32> to vector<8x128xf32>
    %155 = arith.addf %154, %62 : vector<8x128xf32>
    %c0_92 = arith.constant 0 : index
    %c10_93 = arith.constant 10 : index
    %c0_94 = arith.constant 0 : index
    %c0_95 = arith.constant 0 : index
    %156 = vector.load %arg5[%c0_92, %c10_93, %c0_94, %c0_95] : memref<1x13x8x128xf32, #tpu.memory_space<vmem>>, vector<1x1x8x128xf32>
    %157 = vector.shape_cast %156 : vector<1x1x8x128xf32> to vector<8x128xf32>
    %158 = vector.shape_cast %155 : vector<8x128xf32> to vector<1x1x8x128xf32>
    tpu.vector_store %arg5[%c0_92, %c10_93, %c0_94, %c0_95], %158 {strides = array<i32>} : memref<1x13x8x128xf32, #tpu.memory_space<vmem>>, vector<1x1x8x128xf32>,
    %c0_96 = arith.constant 0 : index
    %c11 = arith.constant 11 : index
    %c0_97 = arith.constant 0 : index
    %c0_98 = arith.constant 0 : index
    %159 = vector.load %arg5[%c0_96, %c11, %c0_97, %c0_98] : memref<1x13x8x128xf32, #tpu.memory_space<vmem>>, vector<1x1x8x128xf32>
    %160 = vector.shape_cast %159 : vector<1x1x8x128xf32> to vector<8x128xf32>
    %161 = arith.addf %160, %74 : vector<8x128xf32>
    %c0_99 = arith.constant 0 : index
    %c11_100 = arith.constant 11 : index
    %c0_101 = arith.constant 0 : index
    %c0_102 = arith.constant 0 : index
    %162 = vector.load %arg5[%c0_99, %c11_100, %c0_101, %c0_102] : memref<1x13x8x128xf32, #tpu.memory_space<vmem>>, vector<1x1x8x128xf32>
    %163 = vector.shape_cast %162 : vector<1x1x8x128xf32> to vector<8x128xf32>
    %164 = vector.shape_cast %161 : vector<8x128xf32> to vector<1x1x8x128xf32>
    tpu.vector_store %arg5[%c0_99, %c11_100, %c0_101, %c0_102], %164 {strides = array<i32>} : memref<1x13x8x128xf32, #tpu.memory_space<vmem>>, vector<1x1x8x128xf32>,
    %c0_103 = arith.constant 0 : index
    %c12 = arith.constant 12 : index
    %c0_104 = arith.constant 0 : index
    %c0_105 = arith.constant 0 : index
    %165 = vector.load %arg5[%c0_103, %c12, %c0_104, %c0_105] : memref<1x13x8x128xf32, #tpu.memory_space<vmem>>, vector<1x1x8x128xf32>
    %166 = vector.shape_cast %165 : vector<1x1x8x128xf32> to vector<8x128xf32>
    %167 = arith.addf %166, %86 : vector<8x128xf32>
    %c0_106 = arith.constant 0 : index
    %c12_107 = arith.constant 12 : index
    %c0_108 = arith.constant 0 : index
    %c0_109 = arith.constant 0 : index
    %168 = vector.load %arg5[%c0_106, %c12_107, %c0_108, %c0_109] : memref<1x13x8x128xf32, #tpu.memory_space<vmem>>, vector<1x1x8x128xf32>
    %169 = vector.shape_cast %168 : vector<1x1x8x128xf32> to vector<8x128xf32>
    %170 = vector.shape_cast %167 : vector<8x128xf32> to vector<1x1x8x128xf32>
    tpu.vector_store %arg5[%c0_106, %c12_107, %c0_108, %c0_109], %170 {strides = array<i32>} : memref<1x13x8x128xf32, #tpu.memory_space<vmem>>, vector<1x1x8x128xf32>,
    return
  }
  func.func @transform_0(%arg0: i32, %arg1: i32, %arg2: i32) -> (i32, i32, i32, i32) {
    %c1_i32 = arith.constant 1 : i32
    %0 = arith.muli %arg1, %c1_i32 : i32
    %1 = arith.addi %0, %arg2 : i32
    %c0_i32 = arith.constant 0 : i32
    %c0_i32_0 = arith.constant 0 : i32
    %c0_i32_1 = arith.constant 0 : i32
    return %arg0, %c0_i32, %1, %c0_i32_0 : i32, i32, i32, i32
  }
  func.func @transform_1(%arg0: i32, %arg1: i32, %arg2: i32) -> (i32, i32, i32, i32) {
    %c1_i32 = arith.constant 1 : i32
    %0 = arith.muli %arg1, %c1_i32 : i32
    %1 = arith.addi %0, %arg2 : i32
    %c0_i32 = arith.constant 0 : i32
    %c0_i32_0 = arith.constant 0 : i32
    %c0_i32_1 = arith.constant 0 : i32
    return %arg0, %c0_i32, %1, %c0_i32_0 : i32, i32, i32, i32
  }
  func.func @transform_2(%arg0: i32, %arg1: i32, %arg2: i32) -> (i32, i32, i32, i32) {
    %c1_i32 = arith.constant 1 : i32
    %0 = arith.muli %arg0, %c1_i32 : i32
    %1 = arith.addi %0, %arg1 : i32
    %c0_i32 = arith.constant 0 : i32
    %c0_i32_0 = arith.constant 0 : i32
    %c0_i32_1 = arith.constant 0 : i32
    %c0_i32_2 = arith.constant 0 : i32
    return %1, %c0_i32, %c0_i32_0, %c0_i32_1 : i32, i32, i32, i32
  }
}

</mosaic_0001>

<llo_original>
// kernel: cross_entropy_plus_dice_loss.1
$region0: #{cross_entropy_plus_dice_loss.1}
  #allocation0 [shape = 'u32[]', space=smem, size = 0x4, offset = 0x4, fixed_abs, tag = 'smem constant byte address 0x4 - core index']
  #allocation1 [shape = 'u32[144,128]{1,0:T(1,128)}', space=vmem, size = 0x12000, scoped, tag = 'internal scratch']
  %s0 = inlined_call_operand.vmem [shape: f32[2,4,8,128], index: 0, kind: input, shape index: {}]
  %s1 = inlined_call_operand.vmem [shape: s32[2,1,8,128], index: 1, kind: input, shape index: {}]
  %s2 = inlined_call_operand.vmem [shape: f32[2,13,8,128], index: 2, kind: output, shape index: {}]
  %s3 = sld [smem:[#allocation0]]
  $region45: #{cross_entropy_plus_dice_loss.1} parent=0
    _
  %s5 = ssub.s32 1, %s3
  %s6 = scalar_select 0, %s5, %s3
  loop: start=0, step=1, limit=4
  $region2: #{cross_entropy_plus_dice_loss.1} parent=0 // loop_pre_header
    _
  $region3: #{cross_entropy_plus_dice_loss.1} parent=0 // loop_header
    %s8 = sphi 0, %s12
    %p9 = scmp.ge.s32.totalorder %s8, 4
    %s15 = sphi 0, %s34
    %s16 = sphi 0, %s30
    %s17 = sphi 0, %s26
    %s18 = sphi 0, %s15
    %s19 = sphi 0, %s16
    %s20 = sphi 0, %s17
    %s21 = sphi 0, %s18
    %s22 = sphi 0, %s19
    %s23 = sphi 0, %s20
    %s41 = sphi 0, %s43
    %s44 = sphi 0, %s41
    %s45 = sphi 0, %s44
    %s61 = sphi 0, %s45
    %s71 = sphi 0, %s73
    %s74 = sphi 0, %s71
    %s75 = sphi 0, %s74
    %s91 = sphi 0, %s75
    %s99 = sphi 0, %s101
    %s102 = sphi 0, %s99
    %s103 = sphi 0, %s102
    %s119 = sphi 0, %s103
  $region4: #{cross_entropy_plus_dice_loss.1} parent=0 // loop_header_branch
    %11 = sbr.rel (%p9) target = $region8
  $region5: #{cross_entropy_plus_dice_loss.1} parent=0 // loop_body
    %s13 = ssub.s32 %s8, 1
    %s14 = ssub.s32 %s8, 2
    %s24 = sadd.s32 1, %s17
    %p25 = scmp.ge.s32.totalorder %s24, 1
    %s26 = scalar_select %p25, 0, %s24
    %s27 = sadd.s32 1, %s16
    %s28 = scalar_select %p25, %s27, %s16
    %p29 = scmp.ge.s32.totalorder %s28, 1
    %s30 = scalar_select %p29, 0, %s28
    %s31 = sadd.s32 1, %s15
    %s32 = scalar_select %p29, %s31, %s15
    %p33 = scmp.ge.s32.totalorder %s32, 2
    %s34 = scalar_select %p33, 0, %s32
    %s35 = sadd.s32 %s16, %s17
    %s36 = sadd.s32 %s30, %s26
    %s37 = ssub.s32 %s15, %s34
    %s38 = ssub.s32 %s35, %s36
    %s39 = sor.u32 %s37, %s38
    %p40 = scmp.eq.s32.totalorder %s39, 0
    %s42 = sadd.s32 %s41, 1
    %s43 = scalar_select %p40, %s41, %s42
    %p46 = pneg %p40
    %p47 = scmp.eq.s32.totalorder %s8, 1
    %p48 = por %p46, %p47
    %p49 = scmp.ne.s32.totalorder %s41, %s44
    %p50 = scmp.eq.s32.totalorder %s8, 0
    %p51 = por %p49, %p50
    %p52 = scmp.ne.s32.totalorder %s41, %s44
    %p53 = scmp.eq.s32.totalorder %s13, 1
    %p54 = por %p52, %p53
    %p55 = scmp.ne.s32.totalorder %s44, %s45
    %p56 = scmp.eq.s32.totalorder %s13, 0
    %p57 = por %p55, %p56
    %p58 = scmp.ne.s32.totalorder %s44, %s45
    %p59 = scmp.eq.s32.totalorder %s14, 1
    %p60 = por %p58, %p59
    %p62 = scmp.ne.s32.totalorder %s45, %s61
    %p63 = scmp.eq.s32.totalorder %s14, 0
    %p64 = por %p62, %p63
    %s65 = sadd.s32 %s16, %s17
    %s66 = sadd.s32 %s30, %s26
    %s67 = ssub.s32 %s15, %s34
    %s68 = ssub.s32 %s65, %s66
    %s69 = sor.u32 %s67, %s68
    %p70 = scmp.eq.s32.totalorder %s69, 0
    %s72 = sadd.s32 %s71, 1
    %s73 = scalar_select %p70, %s71, %s72
    %p76 = pneg %p70
    %p77 = scmp.eq.s32.totalorder %s8, 1
    %p78 = por %p76, %p77
    %p79 = scmp.ne.s32.totalorder %s71, %s74
    %p80 = scmp.eq.s32.totalorder %s8, 0
    %p81 = por %p79, %p80
    %p82 = scmp.ne.s32.totalorder %s71, %s74
    %p83 = scmp.eq.s32.totalorder %s13, 1
    %p84 = por %p82, %p83
    %p85 = scmp.ne.s32.totalorder %s74, %s75
    %p86 = scmp.eq.s32.totalorder %s13, 0
    %p87 = por %p85, %p86
    %p88 = scmp.ne.s32.totalorder %s74, %s75
    %p89 = scmp.eq.s32.totalorder %s14, 1
    %p90 = por %p88, %p89
    %p92 = scmp.ne.s32.totalorder %s75, %s91
    %p93 = scmp.eq.s32.totalorder %s14, 0
    %p94 = por %p92, %p93
    %s95 = sadd.s32 %s15, %s16
    %s96 = sadd.s32 %s34, %s30
    %s97 = ssub.s32 %s95, %s96
    %p98 = scmp.eq.s32.totalorder %s97, 0
    %s100 = sadd.s32 %s99, 1
    %s101 = scalar_select %p98, %s99, %s100
    %p104 = pneg %p98
    %p105 = scmp.eq.s32.totalorder %s8, 1
    %p106 = por %p104, %p105
    %p107 = scmp.ne.s32.totalorder %s99, %s102
    %p108 = scmp.eq.s32.totalorder %s8, 0
    %p109 = por %p107, %p108
    %p110 = scmp.ne.s32.totalorder %s99, %s102
    %p111 = scmp.eq.s32.totalorder %s13, 1
    %p112 = por %p110, %p111
    %p113 = scmp.ne.s32.totalorder %s102, %s103
    %p114 = scmp.eq.s32.totalorder %s13, 0
    %p115 = por %p113, %p114
    %p116 = scmp.ne.s32.totalorder %s102, %s103
    %p117 = scmp.eq.s32.totalorder %s14, 1
    %p118 = por %p116, %p117
    %p120 = scmp.ne.s32.totalorder %s103, %s119
    %p121 = scmp.eq.s32.totalorder %s14, 0
    %p122 = por %p120, %p121
    %p123 = scmp.le.s32.totalorder 1, %s8
    %p124 = scmp.lt.s32.totalorder %s8, 3
    %p125 = pnand %p123, %p124
    %p126 = pneg %p125
    // Predicated region
    $region9: #{cross_entropy_plus_dice_loss.1} parent=5 // pred_check
      _
    $region10: #{cross_entropy_plus_dice_loss.1} parent=5 // pred_check_branch
      %128 = sbr.rel (%p125) target = $region12
    $region11: #{cross_entropy_plus_dice_loss.1} parent=5 // pred_region
      %s129 = ssub.s32 %s8, 1
    $region12: #{cross_entropy_plus_dice_loss.1} parent=5 // pred_fallthru
      _
    %p130 = scmp.lt.s32.totalorder %s8, 2
    // Predicated region
    $region13: #{cross_entropy_plus_dice_loss.1} parent=5 // pred_check
      %p131 = pneg %p130
    $region14: #{cross_entropy_plus_dice_loss.1} parent=5 // pred_check_branch
      %133 = sbr.rel (%p131) target = $region16
    $region15: #{cross_entropy_plus_dice_loss.1} parent=5 // pred_region
      // Predicated region
      $region17: #{cross_entropy_plus_dice_loss.1} parent=15 // pred_check
        %p134 = pneg %p51
      $region18: #{cross_entropy_plus_dice_loss.1} parent=15 // pred_check_branch
        %136 = sbr.rel (%p134) target = $region20
      $region19: #{cross_entropy_plus_dice_loss.1} parent=15 // pred_region
        %s137 = sadd.s32 %s16, %s17
        %p138 = scmp.lt.s32.totalorder %s15, 1
        %s139 = scalar_select %p138, %s15, 1
        %p140 = scmp.lt.s32.totalorder %s137, 0
        %s141 = scalar_select %p140, %s137, 0
        %s142 = smul.addr %s139, 4
        %s143 = sadd.s32 %s141, %s142
        %s144 = smul.addr %s143, 8
        %s145 = scalar_lea.vmem %s0, %s144
        %s146 = sadd.s32 %s16, %s17
      $region20: #{cross_entropy_plus_dice_loss.1} parent=15 // pred_fallthru
        _
      // Predicated region
      $region21: #{cross_entropy_plus_dice_loss.1} parent=15 // pred_check
        %p147 = pneg %p81
      $region22: #{cross_entropy_plus_dice_loss.1} parent=15 // pred_check_branch
        %149 = sbr.rel (%p147) target = $region24
      $region23: #{cross_entropy_plus_dice_loss.1} parent=15 // pred_region
        %s150 = sadd.s32 %s16, %s17
        %p151 = scmp.lt.s32.totalorder %s15, 1
        %s152 = scalar_select %p151, %s15, 1
        %p153 = scmp.lt.s32.totalorder %s150, 0
        %s154 = scalar_select %p153, %s150, 0
        %s155 = sadd.s32 %s154, %s152
        %s156 = smul.addr %s155, 8
        %s157 = scalar_lea.vmem %s1, %s156
        %s158 = sadd.s32 %s16, %s17
      $region24: #{cross_entropy_plus_dice_loss.1} parent=15 // pred_fallthru
        _
    $region16: #{cross_entropy_plus_dice_loss.1} parent=5 // pred_fallthru
      _
    %p159 = scmp.le.s32.totalorder 1, %s8
    %p160 = scmp.lt.s32.totalorder %s8, 3
    %p161 = pnand %p159, %p160
    %p162 = pneg %p161
    // Predicated region
    $region25: #{cross_entropy_plus_dice_loss.1} parent=5 // pred_check
      _
    $region26: #{cross_entropy_plus_dice_loss.1} parent=5 // pred_check_branch
      %164 = sbr.rel (%p161) target = $region28
    $region27: #{cross_entropy_plus_dice_loss.1} parent=5 // pred_region
      %s165 = ssub.s32 %s8, 1
      %s166 = sadd.s32 %s19, %s20
      %p167 = scmp.lt.s32.totalorder %s18, 1
      %s168 = scalar_select %p167, %s18, 1
      %p169 = scmp.lt.s32.totalorder %s166, 0
      %s170 = scalar_select %p169, %s166, 0
      %s171 = smul.addr %s168, 4
      %s172 = sadd.s32 %s170, %s171
      %s173 = smul.addr %s172, 8
      %s174 = scalar_lea.vmem %s0, %s173
      %p175 = pneg %p57
      %p176 = pneg %p54
      %s177 = sadd.s32 %s19, %s20
      %p178 = scmp.lt.s32.totalorder %s18, 1
      %s179 = scalar_select %p178, %s18, 1
      %p180 = scmp.lt.s32.totalorder %s177, 0
      %s181 = scalar_select %p180, %s177, 0
      %s182 = sadd.s32 %s181, %s179
      %s183 = smul.addr %s182, 8
      %s184 = scalar_lea.vmem %s1, %s183
      %p185 = pneg %p87
      %p186 = pneg %p84
      %p187 = pneg %p115
      %p188 = pneg %p112
      %s189 = sadd.s32 %s18, %s19
      %p190 = scmp.lt.s32.totalorder %s189, 1
      %s191 = scalar_select %p190, %s189, 1
      %s192 = smul.addr %s191, 13
      %s193 = smul.addr %s192, 8
      %s194 = scalar_lea.vmem %s2, %s193
      %s195 = sadd.s32 %s19, %s20
      %p196 = scmp.lt.s32.totalorder %s18, 1
      %s197 = scalar_select %p196, %s18, 1
      %p198 = scmp.lt.s32.totalorder %s195, 0
      %s199 = scalar_select %p198, %s195, 0
      %s200 = smul.addr %s197, 4
      %s201 = sadd.s32 %s199, %s200
      %s202 = smul.addr %s201, 8
      %s203 = scalar_lea.vmem %s0, %s202
      %s204 = sadd.s32 %s19, %s20
      %s205 = sadd.s32 %s19, %s20
      %p206 = scmp.lt.s32.totalorder %s18, 1
      %s207 = scalar_select %p206, %s18, 1
      %p208 = scmp.lt.s32.totalorder %s205, 0
      %s209 = scalar_select %p208, %s205, 0
      %s210 = sadd.s32 %s209, %s207
      %s211 = smul.addr %s210, 8
      %s212 = scalar_lea.vmem %s1, %s211
      %s213 = sadd.s32 %s19, %s20
      %s214 = sadd.s32 %s18, %s19
      %p215 = scmp.lt.s32.totalorder %s214, 1
      %s216 = scalar_select %p215, %s214, 1
      %s217 = smul.addr %s216, 13
      %s218 = smul.addr %s217, 8
      %s219 = scalar_lea.vmem %s2, %s218
      %s220 = sadd.s32 %s18, %s19
      %p221 = scmp.eq.s32.totalorder %s20, 0
      // Predicated region
      $region29: #{cross_entropy_plus_dice_loss.1} parent=27 // pred_check
        %p222 = pneg %p221
      $region30: #{cross_entropy_plus_dice_loss.1} parent=27 // pred_check_branch
        %224 = sbr.rel (%p222) target = $region32
      $region31: #{cross_entropy_plus_dice_loss.1} parent=27 // pred_region
        %225 = vst [vmem:[%s219] sm:$0xff] 0.0
        %226 = vst [vmem:[%s219 + $0x8] sm:$0xff] 0.0
        %227 = vst [vmem:[%s219 + $0x10] sm:$0xff] 0.0
        %228 = vst [vmem:[%s219 + $0x18] sm:$0xff] 0.0
        %229 = vst [vmem:[%s219 + $0x20] sm:$0xff] 0.0
        %230 = vst [vmem:[%s219 + $0x28] sm:$0xff] 0.0
        %231 = vst [vmem:[%s219 + $0x30] sm:$0xff] 0.0
        %232 = vst [vmem:[%s219 + $0x38] sm:$0xff] 0.0
        %233 = vst [vmem:[%s219 + $0x40] sm:$0xff] 0.0
        %234 = vst [vmem:[%s219 + $0x48] sm:$0xff] 0.0
        %235 = vst [vmem:[%s219 + $0x50] sm:$0xff] 0.0
        %236 = vst [vmem:[%s219 + $0x58] sm:$0xff] 0.0
        %237 = vst [vmem:[%s219 + $0x60] sm:$0xff] 0.0
      $region32: #{cross_entropy_plus_dice_loss.1} parent=27 // pred_fallthru
        _
      %v238 = vld [vmem:[%s212] sm:$0xff]
      %v239 = vld [vmem:[%s203] sm:$0xff]
      %s240 = sadd.s32 0, 8
      %s241 = scalar_lea.vmem %s203, %s240
      %v242 = vld [vmem:[%s241] sm:$0xff]
      %s243 = sadd.s32 0, 16
      %s244 = scalar_lea.vmem %s203, %s243
      %v245 = vld [vmem:[%s244] sm:$0xff]
      %s246 = sadd.s32 0, 24
      %s247 = scalar_lea.vmem %s203, %s246
      %v248 = vld [vmem:[%s247] sm:$0xff]
      %v249 = vmax.f32 %v239, %v242
      %v250 = vmax.f32 %v249, %v245
      %v251 = vmax.f32 %v250, %v248
      %v252 = vsub.f32 %v239, %v251
      %v253 = vmul.f32 %v252, 1.442695
      %v254 = vpow.pop %v253
      %v255 = vsub.f32 %v242, %v251
      %v256 = vmul.f32 %v255, 1.442695
      %v257 = vpow.pop %v256
      %v258 = vsub.f32 %v245, %v251
      %v259 = vmul.f32 %v258, 1.442695
      %v260 = vpow.pop %v259
      %v261 = vsub.f32 %v248, %v251
      %v262 = vmul.f32 %v261, 1.442695
      %v263 = vpow.pop %v262
      %v264 = vadd.f32 %v254, %v257
      %v265 = vadd.f32 %v264, %v260
      %v266 = vadd.f32 %v265, %v263
      %v267 = vlog2.pop %v266
      %v268 = vmul.f32 %v267, 0.6931472
      %v269 = vrcp.pop %v266
      %vm270 = vcmp.lt.s32.totalorder %v238, 4
      %v271 = vsel %vm270, 1, 0
      %v272 = vcvt.s32.f32 %v271
      %vm273 = vcmp.eq.s32.totalorder %v238, 0
      %v274 = vsel %vm273, 1, 0
      %v275 = vcvt.s32.f32 %v274
      %v276 = vmul.f32 %v254, %v269
      %v277 = vmul.f32 %v276, %v275
      %v278 = vadd.f32 %v277, 0.0
      %v279 = vmul.f32 %v276, %v272
      %v280 = vadd.f32 %v279, 0.0
      %v281 = vadd.f32 %v275, 0.0
      %v282 = vmul.f32 %v275, %v239
      %v283 = vadd.f32 %v282, 0.0
      %vm284 = vcmp.eq.s32.totalorder %v238, 1
      %v285 = vsel %vm284, 1, 0
      %v286 = vcvt.s32.f32 %v285
      %v287 = vmul.f32 %v257, %v269
      %v288 = vmul.f32 %v287, %v286
      %v289 = vadd.f32 %v288, 0.0
      %v290 = vmul.f32 %v287, %v272
      %v291 = vadd.f32 %v290, 0.0
      %v292 = vadd.f32 %v286, 0.0
      %v293 = vmul.f32 %v286, %v242
      %v294 = vadd.f32 %v283, %v293
      %vm295 = vcmp.eq.s32.totalorder %v238, 2
      %v296 = vsel %vm295, 1, 0
      %v297 = vcvt.s32.f32 %v296
      %v298 = vmul.f32 %v260, %v269
      %v299 = vmul.f32 %v298, %v297
      %v300 = vadd.f32 %v299, 0.0
      %v301 = vmul.f32 %v298, %v272
      %v302 = vadd.f32 %v301, 0.0
      %v303 = vadd.f32 %v297, 0.0
      %v304 = vmul.f32 %v297, %v245
      %v305 = vadd.f32 %v294, %v304
      %vm306 = vcmp.eq.s32.totalorder %v238, 3
      %v307 = vsel %vm306, 1, 0
      %v308 = vcvt.s32.f32 %v307
      %v309 = vmul.f32 %v263, %v269
      %v310 = vmul.f32 %v309, %v308
      %v311 = vadd.f32 %v310, 0.0
      %v312 = vmul.f32 %v309, %v272
      %v313 = vadd.f32 %v312, 0.0
      %v314 = vadd.f32 %v308, 0.0
      %v315 = vmul.f32 %v308, %v248
      %v316 = vadd.f32 %v305, %v315
      %v317 = vadd.f32 %v251, %v268
      %v318 = vsub.f32 %v317, %v316
      %v319 = vmul.f32 %v318, %v272
      %v320 = vadd.f32 %v319, 0.0
      %v321 = vld [vmem:[%s219] sm:$0xff]
      %v322 = vadd.f32 %v321, %v320
      %323 = vst [vmem:[%s219] sm:$0xff] %v322
      %s324 = scalar_lea.vmem %s219, 8
      %v325 = vld [vmem:[%s324] sm:$0xff]
      %v326 = vadd.f32 %v325, %v278
      %327 = vst [vmem:[%s324] sm:$0xff] %v326
      %s328 = scalar_lea.vmem %s219, 16
      %v329 = vld [vmem:[%s328] sm:$0xff]
      %v330 = vadd.f32 %v329, %v289
      %331 = vst [vmem:[%s328] sm:$0xff] %v330
      %s332 = scalar_lea.vmem %s219, 24
      %v333 = vld [vmem:[%s332] sm:$0xff]
      %v334 = vadd.f32 %v333, %v300
      %335 = vst [vmem:[%s332] sm:$0xff] %v334
      %s336 = scalar_lea.vmem %s219, 32
      %v337 = vld [vmem:[%s336] sm:$0xff]
      %v338 = vadd.f32 %v337, %v311
      %339 = vst [vmem:[%s336] sm:$0xff] %v338
      %s340 = scalar_lea.vmem %s219, 40
      %v341 = vld [vmem:[%s340] sm:$0xff]
      %v342 = vadd.f32 %v341, %v280
      %343 = vst [vmem:[%s340] sm:$0xff] %v342
      %s344 = scalar_lea.vmem %s219, 48
      %v345 = vld [vmem:[%s344] sm:$0xff]
      %v346 = vadd.f32 %v345, %v291
      %347 = vst [vmem:[%s344] sm:$0xff] %v346
      %s348 = scalar_lea.vmem %s219, 56
      %v349 = vld [vmem:[%s348] sm:$0xff]
      %v350 = vadd.f32 %v349, %v302
      %351 = vst [vmem:[%s348] sm:$0xff] %v350
      %s352 = scalar_lea.vmem %s219, 64
      %v353 = vld [vmem:[%s352] sm:$0xff]
      %v354 = vadd.f32 %v353, %v313
      %355 = vst [vmem:[%s352] sm:$0xff] %v354
      %s356 = scalar_lea.vmem %s219, 72
      %v357 = vld [vmem:[%s356] sm:$0xff]
      %v358 = vadd.f32 %v357, %v281
      %359 = vst [vmem:[%s356] sm:$0xff] %v358
      %s360 = scalar_lea.vmem %s219, 80
      %v361 = vld [vmem:[%s360] sm:$0xff]
      %v362 = vadd.f32 %v361, %v292
      %363 = vst [vmem:[%s360] sm:$0xff] %v362
      %s364 = scalar_lea.vmem %s219, 88
      %v365 = vld [vmem:[%s364] sm:$0xff]
      %v366 = vadd.f32 %v365, %v303
      %367 = vst [vmem:[%s364] sm:$0xff] %v366
      %s368 = scalar_lea.vmem %s219, 96
      %v369 = vld [vmem:[%s368] sm:$0xff]
      %v370 = vadd.f32 %v369, %v314
      %371 = vst [vmem:[%s368] sm:$0xff] %v370
      %s372 = sadd.s32 %s18, %s19
      %p373 = scmp.lt.s32.totalorder %s372, 1
      %s374 = scalar_select %p373, %s372, 1
      %s375 = smul.addr %s374, 13
      %s376 = smul.addr %s375, 8
      %s377 = scalar_lea.vmem %s2, %s376
      // Predicated region
      $region33: #{cross_entropy_plus_dice_loss.1} parent=27 // pred_check
        %p378 = pneg %p112
      $region34: #{cross_entropy_plus_dice_loss.1} parent=27 // pred_check_branch
        %380 = sbr.rel (%p378) target = $region36
      $region35: #{cross_entropy_plus_dice_loss.1} parent=27 // pred_region
        %s381 = sadd.s32 %s18, %s19
      $region36: #{cross_entropy_plus_dice_loss.1} parent=27 // pred_fallthru
        _
    $region28: #{cross_entropy_plus_dice_loss.1} parent=5 // pred_fallthru
      _
    %p382 = scmp.le.s32.totalorder 2, %s8
    // Predicated region
    $region37: #{cross_entropy_plus_dice_loss.1} parent=5 // pred_check
      %p383 = pneg %p382
    $region38: #{cross_entropy_plus_dice_loss.1} parent=5 // pred_check_branch
      %385 = sbr.rel (%p383) target = $region40
    $region39: #{cross_entropy_plus_dice_loss.1} parent=5 // pred_region
      %s386 = ssub.s32 %s8, 2
      // Predicated region
      $region41: #{cross_entropy_plus_dice_loss.1} parent=39 // pred_check
        %p387 = pneg %p118
      $region42: #{cross_entropy_plus_dice_loss.1} parent=39 // pred_check_branch
        %389 = sbr.rel (%p387) target = $region44
      $region43: #{cross_entropy_plus_dice_loss.1} parent=39 // pred_region
        %s390 = sadd.s32 %s21, %s22
        %p391 = scmp.lt.s32.totalorder %s390, 1
        %s392 = scalar_select %p391, %s390, 1
        %s393 = smul.addr %s392, 13
        %s394 = smul.addr %s393, 8
        %s395 = scalar_lea.vmem %s2, %s394
      $region44: #{cross_entropy_plus_dice_loss.1} parent=39 // pred_fallthru
        _
    $region40: #{cross_entropy_plus_dice_loss.1} parent=5 // pred_fallthru
      _
  $region6: #{cross_entropy_plus_dice_loss.1} parent=0 // loop_footer
    %s12 = sadd.s32 1, %s8
  $region7: #{cross_entropy_plus_dice_loss.1} parent=0 // loop_footer_branch
    %7 = sbr.rel target = $region3
  $region8: #{cross_entropy_plus_dice_loss.1} parent=0 // loop_exit
    _

</llo_original>
